<compile_context>
chip_gen: v7x
topology: tpu7x:2x2x1
jax: 0.10.0
libtpu: 0.0.40
codegen_flags: <defaults>
</compile_context>

<pallas_src>
import jax
import jax.numpy as jnp
from jax.experimental import pallas as pl
from jax.experimental.pallas import tpu as pltpu

_NEG_BIAS = -1e30  # bias for padded output columns -> exp() underflows to 0 exactly


def _round_up(n, m):
    return ((n + m - 1) // m) * m


def policy_fwd_kernel(x_ref, w1_ref, b1_ref, w2_ref, b2_ref, w3_ref, b3_ref,
                      out_ref):
    """One batch tile: fused MLP + softmax.  Weights/biases are VMEM-resident."""
    x = x_ref[...]                                   # [TILE_B, s]
    s_size = x_ref.shape[1]

    # ---- fc1 + ReLU on the VPU (K = s_size is tiny; MXU would be ~all latency)
    h1 = b1_ref[...]                                 # (1, h), broadcasts below
    for k in range(s_size):                          # static, unrolled (s_size=2)
        h1 = h1 + x[:, k:k + 1] * w1_ref[k:k + 1, :]
    h1 = jnp.maximum(h1, 0.0)                        # [TILE_B, h]

    # ---- fc2 + ReLU on the MXU (single 32x32 pass; no point tiling K)
    h2 = jnp.dot(h1, w2_ref[...], preferred_element_type=jnp.float32)
    h2 = jnp.maximum(h2 + b2_ref[...], 0.0)          # [TILE_B, h]

    # ---- fc3 (logits) on the MXU; N is padded to 128 -> lane-dense output
    logits = jnp.dot(h2, w3_ref[...], preferred_element_type=jnp.float32)
    logits = logits + b3_ref[...]                    # [TILE_B, a_pad]

    # ---- softmax over dim=1 (numerically stable; padded cols contribute 0)
    m = jnp.max(logits, axis=1, keepdims=True)
    e = jnp.exp(logits - m)
    denom = jnp.sum(e, axis=1, keepdims=True)
    out_ref[...] = e * pl.reciprocal(denom, approx=False)


def policy_forward(x, params, *, max_tile_b=512):
    """Wrapper: pad batch / output-feature dims, launch the batch-gridded kernel."""
    w1, b1, w2, b2, w3, b3 = params
    B, s_size = x.shape
    h_size = w1.shape[1]
    a_size = w3.shape[1]

    # Lane-dense output width.
    a_pad = max(128, _round_up(a_size, 128))

    # Batch tile: whole (8-rounded) batch for small B, bounded tile for large B.
    tile_b = _round_up(B, 8) if B <= max_tile_b else max_tile_b
    b_pad = _round_up(B, tile_b)

    # Pad inputs (zero rows are harmless; they are sliced off below).
    x_p = x if b_pad == B else jnp.pad(x, ((0, b_pad - B), (0, 0)))
    if a_pad != a_size:
        w3_p = jnp.pad(w3, ((0, 0), (0, a_pad - a_size)))
        b3_p = jnp.pad(b3, ((0, 0), (0, a_pad - a_size)),
                       constant_values=_NEG_BIAS)
    else:
        w3_p, b3_p = w3, b3

    grid = (b_pad // tile_b,)

    flops = 2 * b_pad * (s_size * h_size + h_size * h_size + h_size * a_pad)
    transcendentals = b_pad * a_pad                      # exp in softmax
    bytes_accessed = 4 * (x_p.size + w1.size + b1.size + w2.size + b2.size
                          + w3_p.size + b3_p.size + b_pad * a_pad)

    out_p = pl.pallas_call(
        policy_fwd_kernel,
        out_shape=jax.ShapeDtypeStruct((b_pad, a_pad), jnp.float32),
        grid=grid,
        in_specs=[
            # streamed per batch tile
            pl.BlockSpec((tile_b, s_size), lambda i: (i, 0)),
            # weights/biases: constant block index -> stay resident in VMEM
            pl.BlockSpec((s_size, h_size), lambda i: (0, 0)),
            pl.BlockSpec((1, h_size), lambda i: (0, 0)),
            pl.BlockSpec((h_size, h_size), lambda i: (0, 0)),
            pl.BlockSpec((1, h_size), lambda i: (0, 0)),
            pl.BlockSpec((h_size, a_pad), lambda i: (0, 0)),
            pl.BlockSpec((1, a_pad), lambda i: (0, 0)),
        ],
        out_specs=pl.BlockSpec((tile_b, a_pad), lambda i: (i, 0)),
        compiler_params=pltpu.CompilerParams(
            dimension_semantics=("parallel",),        # megacore on v7x
            vmem_limit_bytes=32 * 1024 * 1024,        # safe on v5e/v6e/v7x
        ),
        cost_estimate=pl.CostEstimate(
            flops=flops,
            transcendentals=transcendentals,
            bytes_accessed=bytes_accessed,
        ),
    )(x_p, w1, b1, w2, b2, w3_p, b3_p)

    return out_p[:B, :a_size]


def init_params(key, s_size=2, h_size=32, a_size=4):
    """Deterministic init mimicking PyTorch nn.Linear (uniform +/- 1/sqrt(fan_in))."""
    def linear(key, fan_in, fan_out):
        kw, kb = jax.random.split(key)
        bound = 1.0 / jnp.sqrt(fan_in)
        w = jax.random.uniform(kw, (fan_in, fan_out), jnp.float32, -bound, bound)
        b = jax.random.uniform(kb, (1, fan_out), jnp.float32, -bound, bound)
        return w, b

    k1, k2, k3 = jax.random.split(key, 3)
    w1, b1 = linear(k1, s_size, h_size)
    w2, b2 = linear(k2, h_size, h_size)
    w3, b3 = linear(k3, h_size, a_size)
    return (w1, b1, w2, b2, w3, b3)


def policy_forward_ref(x, params):
    """Pure-JAX reference for correctness checking."""
    w1, b1, w2, b2, w3, b3 = params
    h1 = jnp.maximum(x @ w1 + b1, 0.0)
    h2 = jnp.maximum(h1 @ w2 + b2, 0.0)
    logits = h2 @ w3 + b3
    return jax.nn.softmax(logits, axis=1)


if __name__ == "__main__":
    key = jax.random.PRNGKey(0)
    kp, kx = jax.random.split(key)

    s_size, h_size, a_size = 2, 32, 4
    batch = 8

    params = init_params(kp, s_size, h_size, a_size)
    x = jax.random.normal(kx, (batch, s_size), jnp.float32)

    probs = policy_forward(x, params)
    probs = jax.block_until_ready(probs)

    ref = policy_forward_ref(x, params)
    assert probs.shape == (batch, a_size)
    assert jnp.allclose(jnp.sum(probs, axis=1), 1.0, atol=1e-5)
    assert jnp.allclose(probs, ref, atol=1e-5, rtol=1e-5)

    print("KERNEL_OK")
</pallas_src>

<mosaic_0001>
module attributes {stable_mosaic.version = 11 : i64} {
  func.func @policy_fwd_kernel(%arg0: i32, %arg1: memref<8x2xf32, #tpu.memory_space<vmem>>, %arg2: memref<2x32xf32, #tpu.memory_space<vmem>>, %arg3: memref<1x32xf32, #tpu.memory_space<vmem>>, %arg4: memref<32x32xf32, #tpu.memory_space<vmem>>, %arg5: memref<1x32xf32, #tpu.memory_space<vmem>>, %arg6: memref<32x128xf32, #tpu.memory_space<vmem>>, %arg7: memref<1x128xf32, #tpu.memory_space<vmem>>, %arg8: memref<8x128xf32, #tpu.memory_space<vmem>>) attributes {dimension_semantics = [#tpu.dimension_semantics<parallel>], iteration_bounds = array<i64: 1>, scalar_prefetch = 0 : i64, scratch_operands = 0 : i64, tpu.core_type = #tpu.core_type<tc>, window_params = [{transform_indices = @transform_0, window_bounds = array<i64: 8, 2>}, {pipeline_mode = #tpu.pipeline_mode<synchronous>, transform_indices = @transform_1, window_bounds = array<i64: 2, 32>}, {pipeline_mode = #tpu.pipeline_mode<synchronous>, transform_indices = @transform_2, window_bounds = array<i64: 1, 32>}, {pipeline_mode = #tpu.pipeline_mode<synchronous>, transform_indices = @transform_3, window_bounds = array<i64: 32, 32>}, {pipeline_mode = #tpu.pipeline_mode<synchronous>, transform_indices = @transform_4, window_bounds = array<i64: 1, 32>}, {pipeline_mode = #tpu.pipeline_mode<synchronous>, transform_indices = @transform_5, window_bounds = array<i64: 32, 128>}, {pipeline_mode = #tpu.pipeline_mode<synchronous>, transform_indices = @transform_6, window_bounds = array<i64: 1, 128>}, {transform_indices = @transform_7, window_bounds = array<i64: 8, 128>}]} {
    %c0 = arith.constant 0 : index
    %c0_0 = arith.constant 0 : index
    %0 = vector.load %arg1[%c0, %c0_0] : memref<8x2xf32, #tpu.memory_space<vmem>>, vector<8x2xf32>
    %c0_1 = arith.constant 0 : index
    %c0_2 = arith.constant 0 : index
    %1 = vector.load %arg3[%c0_1, %c0_2] : memref<1x32xf32, #tpu.memory_space<vmem>>, vector<1x32xf32>
    %2 = vector.extract_strided_slice %0 {offsets = [0, 0], sizes = [8, 1], strides = [1, 1]} : vector<8x2xf32> to vector<8x1xf32>
    %c0_3 = arith.constant 0 : index
    %c0_4 = arith.constant 0 : index
    %3 = vector.load %arg2[%c0_3, %c0_4] : memref<2x32xf32, #tpu.memory_space<vmem>>, vector<1x32xf32>
    %4 = vector.broadcast %2 : vector<8x1xf32> to vector<8x32xf32>
    %5 = vector.broadcast %3 : vector<1x32xf32> to vector<8x32xf32>
    %6 = arith.mulf %4, %5 : vector<8x32xf32>
    %7 = vector.broadcast %1 : vector<1x32xf32> to vector<8x32xf32>
    %8 = arith.addf %7, %6 : vector<8x32xf32>
    %9 = vector.extract_strided_slice %0 {offsets = [0, 1], sizes = [8, 1], strides = [1, 1]} : vector<8x2xf32> to vector<8x1xf32>
    %c1 = arith.constant 1 : index
    %c0_5 = arith.constant 0 : index
    %10 = vector.load %arg2[%c1, %c0_5] : memref<2x32xf32, #tpu.memory_space<vmem>>, vector<1x32xf32>
    %11 = vector.broadcast %9 : vector<8x1xf32> to vector<8x32xf32>
    %12 = vector.broadcast %10 : vector<1x32xf32> to vector<8x32xf32>
    %13 = arith.mulf %11, %12 : vector<8x32xf32>
    %14 = arith.addf %8, %13 : vector<8x32xf32>
    %cst = arith.constant 0.000000e+00 : f32
    %15 = vector.broadcast %cst : f32 to vector<8x32xf32>
    %16 = arith.maximumf %14, %15 : vector<8x32xf32>
    %c0_6 = arith.constant 0 : index
    %c0_7 = arith.constant 0 : index
    %17 = vector.load %arg4[%c0_6, %c0_7] : memref<32x32xf32, #tpu.memory_space<vmem>>, vector<32x32xf32>
    %cst_8 = arith.constant dense<0.000000e+00> : vector<8x32xf32>
    %18 = tpu.matmul %16, %17, %cst_8 {dimension_numbers = #tpu.dot_dimension_numbers<[1], [0], [0], [1], [0, 0, 1, 1], [], []>} : vector<8x32xf32>, vector<32x32xf32>, vector<8x32xf32> -> vector<8x32xf32>
    %c0_9 = arith.constant 0 : index
    %c0_10 = arith.constant 0 : index
    %19 = vector.load %arg5[%c0_9, %c0_10] : memref<1x32xf32, #tpu.memory_space<vmem>>, vector<1x32xf32>
    %20 = vector.broadcast %19 : vector<1x32xf32> to vector<8x32xf32>
    %21 = arith.addf %18, %20 : vector<8x32xf32>
    %cst_11 = arith.constant 0.000000e+00 : f32
    %22 = vector.broadcast %cst_11 : f32 to vector<8x32xf32>
    %23 = arith.maximumf %21, %22 : vector<8x32xf32>
    %c0_12 = arith.constant 0 : index
    %c0_13 = arith.constant 0 : index
    %24 = vector.load %arg6[%c0_12, %c0_13] : memref<32x128xf32, #tpu.memory_space<vmem>>, vector<32x128xf32>
    %cst_14 = arith.constant dense<0.000000e+00> : vector<8x128xf32>
    %25 = tpu.matmul %23, %24, %cst_14 {dimension_numbers = #tpu.dot_dimension_numbers<[1], [0], [0], [1], [0, 0, 1, 1], [], []>} : vector<8x32xf32>, vector<32x128xf32>, vector<8x128xf32> -> vector<8x128xf32>
    %c0_15 = arith.constant 0 : index
    %c0_16 = arith.constant 0 : index
    %26 = vector.load %arg7[%c0_15, %c0_16] : memref<1x128xf32, #tpu.memory_space<vmem>>, vector<1x128xf32>
    %27 = vector.broadcast %26 : vector<1x128xf32> to vector<8x128xf32>
    %28 = arith.addf %25, %27 : vector<8x128xf32>
    %cst_17 = arith.constant dense<0xFF800000> : vector<8xf32>
    %29 = vector.multi_reduction <maximumf>, %28, %cst_17 [1] : vector<8x128xf32> to vector<8xf32>
    %30 = vector.shape_cast %29 : vector<8xf32> to vector<8x1xf32>
    %31 = vector.broadcast %30 : vector<8x1xf32> to vector<8x128xf32>
    %32 = arith.subf %28, %31 : vector<8x128xf32>
    %33 = math.exp %32 : vector<8x128xf32>
    %cst_18 = arith.constant dense<0.000000e+00> : vector<8xf32>
    %34 = vector.multi_reduction <add>, %33, %cst_18 [1] : vector<8x128xf32> to vector<8xf32>
    %35 = vector.shape_cast %34 : vector<8xf32> to vector<8x1xf32>
    %36 = tpu.reciprocal %35 : vector<8x1xf32> -> vector<8x1xf32>
    %37 = vector.broadcast %36 : vector<8x1xf32> to vector<8x128xf32>
    %38 = arith.mulf %33, %37 : vector<8x128xf32>
    %c0_19 = arith.constant 0 : index
    %c0_20 = arith.constant 0 : index
    %39 = vector.load %arg8[%c0_19, %c0_20] : memref<8x128xf32, #tpu.memory_space<vmem>>, vector<8x128xf32>
    tpu.vector_store %arg8[%c0_19, %c0_20], %38 {strides = array<i32>} : memref<8x128xf32, #tpu.memory_space<vmem>>, vector<8x128xf32>,
    return
  }
  func.func @transform_0(%arg0: i32) -> (i32, i32) {
    %c0_i32 = arith.constant 0 : i32
    %c0_i32_0 = arith.constant 0 : i32
    return %arg0, %c0_i32 : i32, i32
  }
  func.func @transform_1(%arg0: i32) -> (i32, i32) {
    %c0_i32 = arith.constant 0 : i32
    %c0_i32_0 = arith.constant 0 : i32
    %c0_i32_1 = arith.constant 0 : i32
    return %c0_i32, %c0_i32_0 : i32, i32
  }
  func.func @transform_2(%arg0: i32) -> (i32, i32) {
    %c0_i32 = arith.constant 0 : i32
    %c0_i32_0 = arith.constant 0 : i32
    %c0_i32_1 = arith.constant 0 : i32
    return %c0_i32, %c0_i32_0 : i32, i32
  }
  func.func @transform_3(%arg0: i32) -> (i32, i32) {
    %c0_i32 = arith.constant 0 : i32
    %c0_i32_0 = arith.constant 0 : i32
    %c0_i32_1 = arith.constant 0 : i32
    return %c0_i32, %c0_i32_0 : i32, i32
  }
  func.func @transform_4(%arg0: i32) -> (i32, i32) {
    %c0_i32 = arith.constant 0 : i32
    %c0_i32_0 = arith.constant 0 : i32
    %c0_i32_1 = arith.constant 0 : i32
    return %c0_i32, %c0_i32_0 : i32, i32
  }
  func.func @transform_5(%arg0: i32) -> (i32, i32) {
    %c0_i32 = arith.constant 0 : i32
    %c0_i32_0 = arith.constant 0 : i32
    %c0_i32_1 = arith.constant 0 : i32
    return %c0_i32, %c0_i32_0 : i32, i32
  }
  func.func @transform_6(%arg0: i32) -> (i32, i32) {
    %c0_i32 = arith.constant 0 : i32
    %c0_i32_0 = arith.constant 0 : i32
    %c0_i32_1 = arith.constant 0 : i32
    return %c0_i32, %c0_i32_0 : i32, i32
  }
  func.func @transform_7(%arg0: i32) -> (i32, i32) {
    %c0_i32 = arith.constant 0 : i32
    %c0_i32_0 = arith.constant 0 : i32
    return %arg0, %c0_i32 : i32, i32
  }
}

</mosaic_0001>

<llo_original>
// kernel: tpu_custom_call.1
$region0: #{tpu_custom_call.1}
  #allocation0 [shape = 'u32[]', space=smem, size = 0x4, offset = 0x4, fixed_abs, tag = 'smem constant byte address 0x4 - core index']
  #allocation1 [shape = 'u32[144,128]{1,0:T(1,128)}', space=vmem, size = 0x12000, scoped, tag = 'internal scratch']
  %s0 = inlined_call_operand.vmem [shape: f32[8,2], index: 0, kind: input, shape index: {}]
  %s1 = inlined_call_operand.vmem [shape: f32[2,32], index: 1, kind: input, shape index: {}]
  %s2 = inlined_call_operand.vmem [shape: f32[1,32], index: 2, kind: input, shape index: {}]
  %s3 = inlined_call_operand.hbm [shape: f32[32,32], index: 3, kind: input, shape index: {}]
  %s4 = inlined_call_operand.vmem [shape: f32[1,32], index: 4, kind: input, shape index: {}]
  %s5 = inlined_call_operand.hbm [shape: f32[32,128], index: 5, kind: input, shape index: {}]
  %s6 = inlined_call_operand.vmem [shape: f32[1,128], index: 6, kind: input, shape index: {}]
  %s7 = inlined_call_operand.hbm [shape: f32[8,128], index: 7, kind: output, shape index: {}]
  %s8 = sld [smem:[#allocation0]]
  $region46: #{tpu_custom_call.1} parent=0
    _
  %s10 = ssub.s32 1, %s8
  %s11 = scalar_select 0, %s10, %s8
  $region1: #{tpu_custom_call.1} parent=0
    #allocation2 [shape = 'u8[16384]{0}', space=vmem, size = 0x4000, scoped, tag = 'input window, operand 3, single buffered']
    #allocation3 [shape = 's32[1]{0}', space=sflag, size = 0x4, scoped, tag = 'scoped memory for tpu_custom_call.1']
    #allocation4 [shape = 's32[1]{0}', space=sflag, size = 0x4, scoped, tag = 'scoped memory for tpu_custom_call.1']
    #allocation5 [shape = 'u8[16384]{0}', space=vmem, size = 0x4000, scoped, tag = 'input window, operand 5, single buffered']
    #allocation6 [shape = 's32[1]{0}', space=sflag, size = 0x4, scoped, tag = 'scoped memory for tpu_custom_call.1']
    #allocation7 [shape = 'u8[4096]{0}', space=vmem, size = 0x1000, scoped, tag = 'output window, operand 0, single buffered']
    %12 = vsyncpa [#allocation3], 0
    %13 = vsyncpa [#allocation6], 0
    %14 = vsyncpa [#allocation4], 0
    // Predicated region
    $region2: #{tpu_custom_call.1} parent=1 // pred_check
      _
    $region3: #{tpu_custom_call.1} parent=1 // pred_check_branch
      %16 = sbr.rel (0) target = $region5
    $region4: #{tpu_custom_call.1} parent=1 // pred_region
      _
    $region5: #{tpu_custom_call.1} parent=1 // pred_fallthru
      _
    // Predicated region
    $region6: #{tpu_custom_call.1} parent=1 // pred_check
      _
    $region7: #{tpu_custom_call.1} parent=1 // pred_check_branch
      %18 = sbr.rel (0) target = $region9
    $region8: #{tpu_custom_call.1} parent=1 // pred_region
      _
    $region9: #{tpu_custom_call.1} parent=1 // pred_fallthru
      _
    // Predicated region
    $region10: #{tpu_custom_call.1} parent=1 // pred_check
      _
    $region11: #{tpu_custom_call.1} parent=1 // pred_check_branch
      %20 = sbr.rel (0) target = $region13
    $region12: #{tpu_custom_call.1} parent=1 // pred_region
      _
    $region13: #{tpu_custom_call.1} parent=1 // pred_fallthru
      _
    // Predicated region
    $region14: #{tpu_custom_call.1} parent=1 // pred_check
      _
    $region15: #{tpu_custom_call.1} parent=1 // pred_check_branch
      %22 = sbr.rel (0) target = $region17
    $region16: #{tpu_custom_call.1} parent=1 // pred_region
      %s24 = ssub.s32 512, 512
      %25 = vsyncadd [#allocation3], %s24
      %s26 = sshll.u32 [#allocation2], 4
      %s27 = int_to_ptr.vmem [resolvable:$true] %s26
      %32 = dma.hbm_to_vmem [thread:$0]  %s3, 512, %s27, [#allocation3], 128, 128, 8
    $region17: #{tpu_custom_call.1} parent=1 // pred_fallthru
      _
    // Predicated region
    $region18: #{tpu_custom_call.1} parent=1 // pred_check
      _
    $region19: #{tpu_custom_call.1} parent=1 // pred_check_branch
      %34 = sbr.rel (0) target = $region21
    $region20: #{tpu_custom_call.1} parent=1 // pred_region
      _
    $region21: #{tpu_custom_call.1} parent=1 // pred_fallthru
      _
    // Predicated region
    $region22: #{tpu_custom_call.1} parent=1 // pred_check
      _
    $region23: #{tpu_custom_call.1} parent=1 // pred_check_branch
      %36 = sbr.rel (0) target = $region25
    $region24: #{tpu_custom_call.1} parent=1 // pred_region
      %s38 = ssub.s32 512, 512
      %39 = vsyncadd [#allocation6], %s38
      %s40 = sshll.u32 [#allocation5], 4
      %s41 = int_to_ptr.vmem [resolvable:$true] %s40
      %46 = dma.hbm_to_vmem [thread:$0]  %s5, 512, %s41, [#allocation6], 128, 128, 8
    $region25: #{tpu_custom_call.1} parent=1 // pred_fallthru
      _
    // Predicated region
    $region26: #{tpu_custom_call.1} parent=1 // pred_check
      _
    $region27: #{tpu_custom_call.1} parent=1 // pred_check_branch
      %48 = sbr.rel (0) target = $region29
    $region28: #{tpu_custom_call.1} parent=1 // pred_region
      _
    $region29: #{tpu_custom_call.1} parent=1 // pred_fallthru
      _
    // Predicated region
    $region30: #{tpu_custom_call.1} parent=1 // pred_check
      _
    $region31: #{tpu_custom_call.1} parent=1 // pred_check_branch
      %50 = sbr.rel (0) target = $region33
    $region32: #{tpu_custom_call.1} parent=1 // pred_region
      %51 = dma.done [#allocation3], 512
    $region33: #{tpu_custom_call.1} parent=1 // pred_fallthru
      _
    // Predicated region
    $region34: #{tpu_custom_call.1} parent=1 // pred_check
      _
    $region35: #{tpu_custom_call.1} parent=1 // pred_check_branch
      %53 = sbr.rel (0) target = $region37
    $region36: #{tpu_custom_call.1} parent=1 // pred_region
      %54 = dma.done [#allocation6], 512
    $region37: #{tpu_custom_call.1} parent=1 // pred_fallthru
      _
    %v55 = vld [vmem:[%s0] sm:$0xff]
    %v56 = vld [vmem:[%s2] sm:$0x1]
    %v57 = vld [vmem:[%s1] sm:$0x1]
    %59 = vset.pattern.permute.xlu0 0
    %60 = vperm.xlu0 %59, %v55
    %v61 = vpop.permute.xlu0 %60
    %v63 = vlaneseq
    %v64 = vshrl.u32 %v63, 7
    %v65 = vsub.s32 0, %v64
    %v66 = vrot.slane %v57, %v65
    %v67 = vmul.f32 %v61, %v66
    %v69 = vlaneseq
    %v70 = vshrl.u32 %v69, 7
    %v71 = vsub.s32 0, %v70
    %v72 = vrot.slane %v56, %v71
    %v74 = vadd.f32 %v72, %v67
    %v75 = vld [vmem:[%s1 + $0x1] sm:$0x1]
    %76 = vset.pattern.permute.xlu0 1
    %77 = vperm.xlu0 %76, %v55
    %v78 = vpop.permute.xlu0 %77
    %v80 = vlaneseq
    %v81 = vshrl.u32 %v80, 7
    %v82 = vsub.s32 0, %v81
    %v83 = vrot.slane %v75, %v82
    %v84 = vmul.f32 %v78, %v83
    %v85 = vadd.f32 %v74, %v84
    %v86 = vmax.f32 %v85, 0.0
    %v87 = vld [vmem:[#allocation2] sm:$0xff]
    %v88 = vld [vmem:[#allocation2 + $0x8] sm:$0xff]
    %v89 = vld [vmem:[#allocation2 + $0x10] sm:$0xff]
    %v90 = vld [vmem:[#allocation2 + $0x18] sm:$0xff]
    %v91 = vld [vmem:[%s4] sm:$0x1]
    %v93 = vlaneseq
    %v94 = vshrl.u32 %v93, 7
    %v95 = vsub.s32 0, %v94
    %v96 = vrot.slane %v91, %v95
    %vm98 = vcmask 261120
    %v100 = vsel %vm98, %v86, 0
    %102 = vmatprep.subr.mxu0 0.0
    %103 = vmatpush1.msra.mxu0 %v87
    %104 = vmatprep.subr.mxu0 0.0
    %105 = vmatpush1.msra.mxu0 %v88
    %106 = vmatprep.subr.mxu0 0.0
    %107 = vmatpush1.msra.mxu0 %v89
    %108 = vmatprep.subr.mxu0 0.0
    %109 = vmatpush1.msra.mxu0 %v90
    %110 = vmatprep.subr.mxu0 0.0
    %111 = vmatpush1.msra.mxu0 0.0
    %112 = vmatprep.subr.mxu0 0.0
    %113 = vmatpush1.msra.mxu0 0.0
    %114 = vmatprep.subr.mxu0 0.0
    %115 = vmatpush1.msra.mxu0 0.0
    %116 = vmatprep.subr.mxu0 0.0
    %117 = vmatpush1.msra.mxu0 0.0
    %118 = vmatprep.subr.mxu0 0.0
    %119 = vmatpush1.msra.mxu0 0.0
    %120 = vmatprep.subr.mxu0 0.0
    %121 = vmatpush1.msra.mxu0 0.0
    %122 = vmatprep.subr.mxu0 0.0
    %123 = vmatpush1.msra.mxu0 0.0
    %124 = vmatprep.subr.mxu0 0.0
    %125 = vmatpush1.msra.mxu0 0.0
    %126 = vmatprep.subr.mxu0 0.0
    %127 = vmatpush1.msra.mxu0 0.0
    %128 = vmatprep.subr.mxu0 0.0
    %129 = vmatpush1.msra.mxu0 0.0
    %130 = vmatprep.subr.mxu0 0.0
    %131 = vmatpush1.msra.mxu0 0.0
    %132 = vmatprep.subr.mxu0 0.0
    %133 = vmatpush1.msra.mxu0 0.0
    %134 = vmatprep.subr.mxu0 0.0
    %135 = vmatpush1.msra.mxu0 0.0
    %136 = vmatprep.subr.mxu0 0.0
    %137 = vmatpush1.msra.mxu0 0.0
    %138 = vmatprep.subr.mxu0 0.0
    %139 = vmatpush1.msra.mxu0 0.0
    %140 = vmatprep.subr.mxu0 0.0
    %141 = vmatpush1.msra.mxu0 0.0
    %142 = vmatprep.subr.mxu0 0.0
    %143 = vmatpush1.msra.mxu0 0.0
    %144 = vmatprep.subr.mxu0 0.0
    %145 = vmatpush1.msra.mxu0 0.0
    %146 = vmatprep.subr.mxu0 0.0
    %147 = vmatpush1.msra.mxu0 0.0
    %148 = vmatprep.subr.mxu0 0.0
    %149 = vmatpush1.msra.mxu0 0.0
    %150 = vmatprep.subr.mxu0 0.0
    %151 = vmatpush1.msra.mxu0 0.0
    %152 = vmatprep.subr.mxu0 0.0
    %153 = vmatpush1.msra.mxu0 0.0
    %154 = vmatprep.subr.mxu0 0.0
    %155 = vmatpush1.msra.mxu0 0.0
    %156 = vmatprep.subr.mxu0 0.0
    %157 = vmatpush1.msra.mxu0 0.0
    %158 = vmatprep.subr.mxu0 0.0
    %159 = vmatpush1.msra.mxu0 0.0
    %160 = vmatprep.subr.mxu0 0.0
    %161 = vmatpush1.msra.mxu0 0.0
    %162 = vmatprep.subr.mxu0 0.0
    %163 = vmatpush1.msra.mxu0 0.0
    %164 = vmatprep.subr.mxu0 0.0
    %165 = vmatpush1.msra.mxu0 0.0
    %166 = vmatprep.mubr.f32.mxu0 0.0
    %167 = vmatmul.mubr.f32.gmra.mrb[0].mxu0 %v100
    %v168 = vpop.f32.mrb[0].mxu0
    %v169 = vadd.f32 %v96, %v168
    %v170 = vpop.f32.mrb[0].mxu0
    %171 = vdwg.mxu0
    %v172 = vmax.f32 %v169, 0.0
    %v173 = vld [vmem:[#allocation5] sm:$0xff]
    %v174 = vld [vmem:[#allocation5 + $0x8] sm:$0xff]
    %v175 = vld [vmem:[#allocation5 + $0x10] sm:$0xff]
    %v176 = vld [vmem:[#allocation5 + $0x18] sm:$0xff]
    %v177 = vld [vmem:[%s6] sm:$0x1]
    %v179 = vlaneseq
    %v180 = vshrl.u32 %v179, 7
    %v181 = vsub.s32 0, %v180
    %v182 = vrot.slane %v177, %v181
    %v185 = vsel %vm98, %v172, 0
    %187 = vmatprep.subr.mxu0 0.0
    %188 = vmatpush1.msra.mxu0 %v173
    %189 = vmatprep.subr.mxu0 0.0
    %190 = vmatpush1.msra.mxu0 %v174
    %191 = vmatprep.subr.mxu0 0.0
    %192 = vmatpush1.msra.mxu0 %v175
    %193 = vmatprep.subr.mxu0 0.0
    %194 = vmatpush1.msra.mxu0 %v176
    %195 = vmatprep.subr.mxu0 0.0
    %196 = vmatpush1.msra.mxu0 0.0
    %197 = vmatprep.subr.mxu0 0.0
    %198 = vmatpush1.msra.mxu0 0.0
    %199 = vmatprep.subr.mxu0 0.0
    %200 = vmatpush1.msra.mxu0 0.0
    %201 = vmatprep.subr.mxu0 0.0
    %202 = vmatpush1.msra.mxu0 0.0
    %203 = vmatprep.subr.mxu0 0.0
    %204 = vmatpush1.msra.mxu0 0.0
    %205 = vmatprep.subr.mxu0 0.0
    %206 = vmatpush1.msra.mxu0 0.0
    %207 = vmatprep.subr.mxu0 0.0
    %208 = vmatpush1.msra.mxu0 0.0
    %209 = vmatprep.subr.mxu0 0.0
    %210 = vmatpush1.msra.mxu0 0.0
    %211 = vmatprep.subr.mxu0 0.0
    %212 = vmatpush1.msra.mxu0 0.0
    %213 = vmatprep.subr.mxu0 0.0
    %214 = vmatpush1.msra.mxu0 0.0
    %215 = vmatprep.subr.mxu0 0.0
    %216 = vmatpush1.msra.mxu0 0.0
    %217 = vmatprep.subr.mxu0 0.0
    %218 = vmatpush1.msra.mxu0 0.0
    %219 = vmatprep.subr.mxu0 0.0
    %220 = vmatpush1.msra.mxu0 0.0
    %221 = vmatprep.subr.mxu0 0.0
    %222 = vmatpush1.msra.mxu0 0.0
    %223 = vmatprep.subr.mxu0 0.0
    %224 = vmatpush1.msra.mxu0 0.0
    %225 = vmatprep.subr.mxu0 0.0
    %226 = vmatpush1.msra.mxu0 0.0
    %227 = vmatprep.subr.mxu0 0.0
    %228 = vmatpush1.msra.mxu0 0.0
    %229 = vmatprep.subr.mxu0 0.0
    %230 = vmatpush1.msra.mxu0 0.0
    %231 = vmatprep.subr.mxu0 0.0
    %232 = vmatpush1.msra.mxu0 0.0
    %233 = vmatprep.subr.mxu0 0.0
    %234 = vmatpush1.msra.mxu0 0.0
    %235 = vmatprep.subr.mxu0 0.0
    %236 = vmatpush1.msra.mxu0 0.0
    %237 = vmatprep.subr.mxu0 0.0
    %238 = vmatpush1.msra.mxu0 0.0
    %239 = vmatprep.subr.mxu0 0.0
    %240 = vmatpush1.msra.mxu0 0.0
    %241 = vmatprep.subr.mxu0 0.0
    %242 = vmatpush1.msra.mxu0 0.0
    %243 = vmatprep.subr.mxu0 0.0
    %244 = vmatpush1.msra.mxu0 0.0
    %245 = vmatprep.subr.mxu0 0.0
    %246 = vmatpush1.msra.mxu0 0.0
    %247 = vmatprep.subr.mxu0 0.0
    %248 = vmatpush1.msra.mxu0 0.0
    %249 = vmatprep.subr.mxu0 0.0
    %250 = vmatpush1.msra.mxu0 0.0
    %251 = vmatprep.mubr.f32.mxu0 0.0
    %252 = vmatmul.mubr.f32.gmra.mrb[0].mxu0 %v185
    %v253 = vpop.f32.mrb[0].mxu0
    %v254 = vadd.f32 %v182, %v253
    %v255 = vpop.f32.mrb[0].mxu0
    %256 = vdwg.mxu0
    %257 = vmax.xlane.f32.xlu0 %v254
    %v258 = vpop.xlane.xlu0 %257
    %v259 = vsub.f32 %v254, %v258
    %v260 = vmul.f32 %v259, 1.442695
    %v261 = vpow.pop %v260
    %262 = vadd.xlane.f32.xlu0 %v261
    %v263 = vpop.xlane.xlu0 %262
    %v264 = vrcp.pop %v263
    %v265 = vmul.f32 %v261, %v264
    %266 = vst [vmem:[#allocation7] sm:$0xff] %v265
    // Predicated region
    $region38: #{tpu_custom_call.1} parent=1 // pred_check
      _
    $region39: #{tpu_custom_call.1} parent=1 // pred_check_branch
      %268 = sbr.rel (0) target = $region41
    $region40: #{tpu_custom_call.1} parent=1 // pred_region
      %s270 = ssub.s32 128, 128
      %271 = vsyncadd [#allocation4], %s270
      %s273 = sshll.u32 [#allocation7], 4
      %s274 = int_to_ptr.vmem [resolvable:$true] %s273
      %276 = dma.vmem_to_hbm [thread:$0]  %s274, 128, %s7, [#allocation4]
    $region41: #{tpu_custom_call.1} parent=1 // pred_fallthru
      _
    // Predicated region
    $region42: #{tpu_custom_call.1} parent=1 // pred_check
      _
    $region43: #{tpu_custom_call.1} parent=1 // pred_check_branch
      %278 = sbr.rel (0) target = $region45
    $region44: #{tpu_custom_call.1} parent=1 // pred_region
      %279 = dma.done [#allocation4], 128
    $region45: #{tpu_custom_call.1} parent=1 // pred_fallthru
      _
    %280 = vsyncpa [#allocation3], 1
    %281 = vsyncpa [#allocation6], 1
    %282 = vsyncpa [#allocation4], 1

</llo_original>
